<compile_context>
chip_gen: v7x
topology: tpu7x:2x2x1
jax: 0.10.0
libtpu: 0.0.40
codegen_flags: <defaults>
</compile_context>

<pallas_src>
import functools

import jax
import jax.numpy as jnp
from jax import lax
from jax.experimental import pallas as pl
from jax.experimental.pallas import tpu as pltpu


_LANE = 128
_SUBLANE = 8


def _round_up(x, m):
    return ((x + m - 1) // m) * m


def _padded_bytes_2d(rows, cols, itemsize=4):
    # Real VMEM footprint of a 2-D block after (8, 128) layout tiling.
    return _round_up(max(rows, 1), _SUBLANE) * _round_up(max(cols, 1), _LANE) * itemsize


def _gcn_hidden_sum_kernel(x_ref, w1t_ref, b1_ref, o_ref, *,
                           n_nodes, tile_n, tiles_per_core, num_partitions):
    """Accumulates sum-over-nodes of relu(x @ W1.T + b1) into o_ref.

    o_ref is an (8, hidden) resident block per partition; all 8 rows carry the
    same partial sum (they fall out of the ones[8, TN] MXU reduction for free).
    """
    c = pl.program_id(0)          # node-range partition ("parallel" axis)
    t = pl.program_id(1)          # node tile within the partition ("arbitrary")

    @pl.when(t == 0)
    def _init():
        o_ref[...] = jnp.zeros_like(o_ref)

    # Layer 1 in canonical [M,K]@[K,N] form (W1 pre-transposed in the wrapper).
    x = x_ref[...]                                                 # [TN, in]
    h = jnp.dot(x, w1t_ref[...],
                preferred_element_type=jnp.float32)                # [TN, hidden]
    h = jnp.maximum(h + b1_ref[...], 0.0)                          # bias + ReLU

    # Node-sum reduction on the MXU: ones[8, TN] @ h -> [8, hidden].
    ones = jnp.ones((8, tile_n), jnp.float32)

    def _accumulate(hv):
        o_ref[...] += lax.dot_general(
            ones, hv,
            dimension_numbers=(((1,), (0,)), ((), ())),
            preferred_element_type=jnp.float32)

    start = (c * tiles_per_core + t) * tile_n                      # global row offset

    if num_partitions * tiles_per_core * tile_n == n_nodes:
        # Static fast path: every tile is full -> no masking anywhere.
        _accumulate(h)
    else:
        needs_mask = start + tile_n > n_nodes

        @pl.when(needs_mask)
        def _tail():
            # Padded / out-of-range rows may hold garbage (even NaN): select
            # them to zero on h itself before the reduction (NaN*0 safe).
            row = start + lax.broadcasted_iota(jnp.int32, h.shape, 0)
            _accumulate(jnp.where(row < n_nodes, h, 0.0))

        @pl.when(jnp.logical_not(needs_mask))
        def _body():
            _accumulate(h)


def simple_gcn_forward(node_feats, edges, w1, b1, w2, b2, *, tile_n=None):
    """node_feats: [N, in]; w1: [hidden, in]; b1: [hidden]; w2: [out, hidden];
    b2: [out]. Returns [out] == (relu(x @ W1.T + b1) @ W2.T + b2).mean(0)."""
    del edges  # unused by the reference forward
    n, in_feats = node_feats.shape
    hidden_feats = w1.shape[0]
    itemsize = jnp.dtype(node_feats.dtype).itemsize

    # ---- generation-aware budget for the double-buffered x stream ----
    try:
        is_v7 = "v7" in jax.devices()[0].device_kind.lower()
    except Exception:
        is_v7 = True  # be conservative (smallest VMEM) if detection fails
    x_stream_budget = (20 << 20) if is_v7 else (48 << 20)

    in_padded = _round_up(in_feats, _LANE)
    if tile_n is None:
        tile_n = x_stream_budget // (2 * in_padded * itemsize)
        tile_n = max(_SUBLANE, min(tile_n, 16384))
    if tile_n >= n:
        tile_n = n                    # full node axis -> no alignment required
    else:
        tile_n = max(_SUBLANE, (tile_n // _SUBLANE) * _SUBLANE)

    n_blocks = pl.cdiv(n, tile_n)
    num_partitions = 2 if n_blocks >= 2 else 1        # v7x: one per TensorCore
    tiles_per_core = pl.cdiv(n_blocks, num_partitions)

    if num_partitions * tiles_per_core == n_blocks:
        x_index_map = lambda c, t: (c * tiles_per_core + t, 0)
    else:
        # Some (c, t) steps fall past the last block: clamp the DMA to the last
        # valid block; the kernel masks those rows to zero anyway.
        x_index_map = lambda c, t: (
            jnp.minimum(c * tiles_per_core + t, n_blocks - 1), 0)

    w1t = jnp.transpose(w1)                            # [in, hidden], once, tiny
    b1_r = b1.reshape(1, hidden_feats)

    # ---- padding-aware VMEM accounting for vmem_limit_bytes ----
    est = (2 * _padded_bytes_2d(tile_n, in_feats, itemsize)      # x (dbl-buffered)
           + 2 * _padded_bytes_2d(in_feats, hidden_feats)        # W1.T resident
           + 2 * _padded_bytes_2d(1, hidden_feats)               # b1 resident
           + 2 * _padded_bytes_2d(8, hidden_feats))              # out block
    vmem_cap = (56 << 20) if is_v7 else (100 << 20)
    vmem_limit = int(min(max(est + (8 << 20), 32 << 20), vmem_cap))

    kernel = functools.partial(
        _gcn_hidden_sum_kernel,
        n_nodes=n, tile_n=tile_n,
        tiles_per_core=tiles_per_core, num_partitions=num_partitions)

    partials = pl.pallas_call(
        kernel,
        out_shape=jax.ShapeDtypeStruct((num_partitions * 8, hidden_feats),
                                       jnp.float32),
        grid_spec=pltpu.PrefetchScalarGridSpec(
            num_scalar_prefetch=0,
            grid=(num_partitions, tiles_per_core),
            in_specs=[
                pl.BlockSpec((tile_n, in_feats), x_index_map),               # x
                pl.BlockSpec((in_feats, hidden_feats), lambda c, t: (0, 0)), # W1.T
                pl.BlockSpec((1, hidden_feats), lambda c, t: (0, 0)),        # b1
            ],
            out_specs=pl.BlockSpec((8, hidden_feats), lambda c, t: (c, 0)),
        ),
        compiler_params=pltpu.CompilerParams(
            dimension_semantics=("parallel", "arbitrary"),
            vmem_limit_bytes=vmem_limit,
        ),
    )(node_feats, w1t, b1_r)

    # Each (8, hidden) partition block carries its partial sum in every row.
    h_sum = partials.reshape(num_partitions, 8, hidden_feats)[:, 0, :].sum(axis=0)
    h_mean = h_sum * jnp.float32(1.0 / n)
    # Tiny epilogue in plain XLA: layer 2 on the mean vector.
    return h_mean @ w2.T + b2


def _init_params(key, in_feats, hidden_feats, out_feats):
    # Deterministic synthetic init mirroring nn.Linear parameter shapes.
    k1, k2, k3, k4 = jax.random.split(key, 4)
    w1 = jax.random.normal(k1, (hidden_feats, in_feats), jnp.float32) * 0.1
    b1 = jax.random.normal(k2, (hidden_feats,), jnp.float32) * 0.1
    w2 = jax.random.normal(k3, (out_feats, hidden_feats), jnp.float32) * 0.1
    b2 = jax.random.normal(k4, (out_feats,), jnp.float32) * 0.1
    return w1, b1, w2, b2


if __name__ == "__main__":
    in_feats, hidden_feats, out_feats = 16, 32, 8
    n_nodes = 8

    key = jax.random.PRNGKey(0)
    k_x, k_p = jax.random.split(key)
    node_feats = jax.random.normal(k_x, (n_nodes, in_feats), jnp.float32)
    edges = jnp.zeros((4, 2), jnp.int32)  # unused, matches forward signature
    w1, b1, w2, b2 = _init_params(k_p, in_feats, hidden_feats, out_feats)

    out = simple_gcn_forward(node_feats, edges, w1, b1, w2, b2)
    out = jax.block_until_ready(out)

    # Reference check in plain JAX (same math as the PyTorch module).
    h_ref = jnp.maximum(node_feats @ w1.T + b1, 0.0)
    ref = (h_ref @ w2.T + b2).mean(axis=0)
    assert out.shape == (out_feats,)
    assert jnp.allclose(out, ref, atol=1e-5, rtol=1e-5)

    # Exercise the multi-tile, two-partition, masked-tail + clamped-block path.
    n_big = 300  # not a multiple of the tile, not a multiple of partitions
    x_big = jax.random.normal(jax.random.PRNGKey(1), (n_big, in_feats), jnp.float32)
    out_big = jax.block_until_ready(
        simple_gcn_forward(x_big, edges, w1, b1, w2, b2, tile_n=64))
    ref_big = (jnp.maximum(x_big @ w1.T + b1, 0.0) @ w2.T + b2).mean(axis=0)
    assert jnp.allclose(out_big, ref_big, atol=1e-4, rtol=1e-4)

    print("KERNEL_OK")
</pallas_src>

<mosaic_0001>
module attributes {stable_mosaic.version = 11 : i64} {
  func.func @_gcn_hidden_sum_kernel(%arg0: i32, %arg1: i32, %arg2: memref<8x16xf32, #tpu.memory_space<vmem>>, %arg3: memref<16x32xf32, #tpu.memory_space<vmem>>, %arg4: memref<1x32xf32, #tpu.memory_space<vmem>>, %arg5: memref<8x32xf32, #tpu.memory_space<vmem>>) attributes {dimension_semantics = [#tpu.dimension_semantics<parallel>, #tpu.dimension_semantics<arbitrary>], iteration_bounds = array<i64: 1, 1>, scalar_prefetch = 0 : i64, scratch_operands = 0 : i64, tpu.core_type = #tpu.core_type<tc>, window_params = [{transform_indices = @transform_0, window_bounds = array<i64: 8, 16>}, {pipeline_mode = #tpu.pipeline_mode<synchronous>, transform_indices = @transform_1, window_bounds = array<i64: 16, 32>}, {pipeline_mode = #tpu.pipeline_mode<synchronous>, transform_indices = @transform_2, window_bounds = array<i64: 1, 32>}, {transform_indices = @transform_3, window_bounds = array<i64: 8, 32>}]} {
    %c0_i32 = arith.constant 0 : i32
    %0 = arith.cmpi eq, %arg1, %c0_i32 : i32
    %1 = arith.extui %0 : i1 to i32
    %c0_i32_0 = arith.constant 0 : i32
    %2 = arith.cmpi ne, %1, %c0_i32_0 : i32
    scf.if %2 {
      %cst_13 = arith.constant 0.000000e+00 : f32
      %16 = vector.broadcast %cst_13 : f32 to vector<8x32xf32>
      %c0_14 = arith.constant 0 : index
      %c0_15 = arith.constant 0 : index
      %17 = vector.load %arg5[%c0_14, %c0_15] : memref<8x32xf32, #tpu.memory_space<vmem>>, vector<8x32xf32>
      tpu.vector_store %arg5[%c0_14, %c0_15], %16 {strides = array<i32>} : memref<8x32xf32, #tpu.memory_space<vmem>>, vector<8x32xf32>,
    } else {
    }
    %c0 = arith.constant 0 : index
    %c0_1 = arith.constant 0 : index
    %3 = vector.load %arg2[%c0, %c0_1] : memref<8x16xf32, #tpu.memory_space<vmem>>, vector<8x16xf32>
    %c0_2 = arith.constant 0 : index
    %c0_3 = arith.constant 0 : index
    %4 = vector.load %arg3[%c0_2, %c0_3] : memref<16x32xf32, #tpu.memory_space<vmem>>, vector<16x32xf32>
    %cst = arith.constant dense<0.000000e+00> : vector<8x32xf32>
    %5 = tpu.matmul %3, %4, %cst {dimension_numbers = #tpu.dot_dimension_numbers<[1], [0], [0], [1], [0, 0, 1, 1], [], []>} : vector<8x16xf32>, vector<16x32xf32>, vector<8x32xf32> -> vector<8x32xf32>
    %c0_4 = arith.constant 0 : index
    %c0_5 = arith.constant 0 : index
    %6 = vector.load %arg4[%c0_4, %c0_5] : memref<1x32xf32, #tpu.memory_space<vmem>>, vector<1x32xf32>
    %7 = vector.broadcast %6 : vector<1x32xf32> to vector<8x32xf32>
    %8 = arith.addf %5, %7 : vector<8x32xf32>
    %cst_6 = arith.constant 0.000000e+00 : f32
    %9 = vector.broadcast %cst_6 : f32 to vector<8x32xf32>
    %10 = arith.maximumf %8, %9 : vector<8x32xf32>
    %cst_7 = arith.constant 1.000000e+00 : f32
    %11 = vector.broadcast %cst_7 : f32 to vector<8x8xf32>
    %c0_8 = arith.constant 0 : index
    %c0_9 = arith.constant 0 : index
    %12 = vector.load %arg5[%c0_8, %c0_9] : memref<8x32xf32, #tpu.memory_space<vmem>>, vector<8x32xf32>
    %cst_10 = arith.constant dense<0.000000e+00> : vector<8x32xf32>
    %13 = tpu.matmul %11, %10, %cst_10 {dimension_numbers = #tpu.dot_dimension_numbers<[1], [0], [0], [1], [0, 0, 1, 1], [], []>} : vector<8x8xf32>, vector<8x32xf32>, vector<8x32xf32> -> vector<8x32xf32>
    %14 = arith.addf %12, %13 : vector<8x32xf32>
    %c0_11 = arith.constant 0 : index
    %c0_12 = arith.constant 0 : index
    %15 = vector.load %arg5[%c0_11, %c0_12] : memref<8x32xf32, #tpu.memory_space<vmem>>, vector<8x32xf32>
    tpu.vector_store %arg5[%c0_11, %c0_12], %14 {strides = array<i32>} : memref<8x32xf32, #tpu.memory_space<vmem>>, vector<8x32xf32>,
    return
  }
  func.func @transform_0(%arg0: i32, %arg1: i32) -> (i32, i32) {
    %c1_i32 = arith.constant 1 : i32
    %0 = arith.muli %arg0, %c1_i32 : i32
    %1 = arith.addi %0, %arg1 : i32
    %c0_i32 = arith.constant 0 : i32
    %c0_i32_0 = arith.constant 0 : i32
    return %1, %c0_i32 : i32, i32
  }
  func.func @transform_1(%arg0: i32, %arg1: i32) -> (i32, i32) {
    %c0_i32 = arith.constant 0 : i32
    %c0_i32_0 = arith.constant 0 : i32
    %c0_i32_1 = arith.constant 0 : i32
    return %c0_i32, %c0_i32_0 : i32, i32
  }
  func.func @transform_2(%arg0: i32, %arg1: i32) -> (i32, i32) {
    %c0_i32 = arith.constant 0 : i32
    %c0_i32_0 = arith.constant 0 : i32
    %c0_i32_1 = arith.constant 0 : i32
    return %c0_i32, %c0_i32_0 : i32, i32
  }
  func.func @transform_3(%arg0: i32, %arg1: i32) -> (i32, i32) {
    %c0_i32 = arith.constant 0 : i32
    %c0_i32_0 = arith.constant 0 : i32
    return %arg0, %c0_i32 : i32, i32
  }
}

</mosaic_0001>

<llo_original>
// kernel: tpu_custom_call.1
$region0: #{tpu_custom_call.1}
  #allocation0 [shape = 'u32[]', space=smem, size = 0x4, offset = 0x4, fixed_abs, tag = 'smem constant byte address 0x4 - core index']
  #allocation1 [shape = 'u32[144,128]{1,0:T(1,128)}', space=vmem, size = 0x12000, scoped, tag = 'internal scratch']
  %s0 = inlined_call_operand.hbm [shape: f32[8,16], index: 0, kind: input, shape index: {}]
  %s1 = inlined_call_operand.hbm [shape: f32[16,32], index: 1, kind: input, shape index: {}]
  %s2 = inlined_call_operand.vmem [shape: f32[1,32], index: 2, kind: input, shape index: {}]
  %s3 = inlined_call_operand.hbm [shape: f32[8,32], index: 3, kind: output, shape index: {}]
  %s4 = sld [smem:[#allocation0]]
  $region34: #{tpu_custom_call.1} parent=0
    _
  %s6 = ssub.s32 1, %s4
  %s7 = scalar_select 0, %s6, %s4
  $region1: #{tpu_custom_call.1} parent=0
    #allocation2 [shape = 'u8[4096]{0}', space=vmem, size = 0x1000, scoped, tag = 'input window, operand 0, single buffered']
    #allocation3 [shape = 's32[1]{0}', space=sflag, size = 0x4, scoped, tag = 'scoped memory for tpu_custom_call.1']
    #allocation4 [shape = 's32[1]{0}', space=sflag, size = 0x4, scoped, tag = 'scoped memory for tpu_custom_call.1']
    #allocation5 [shape = 'u8[8192]{0}', space=vmem, size = 0x2000, scoped, tag = 'input window, operand 1, single buffered']
    #allocation6 [shape = 's32[1]{0}', space=sflag, size = 0x4, scoped, tag = 'scoped memory for tpu_custom_call.1']
    #allocation7 [shape = 'u8[4096]{0}', space=vmem, size = 0x1000, scoped, tag = 'output window, operand 0, single buffered']
    %8 = vsyncpa [#allocation3], 0
    %9 = vsyncpa [#allocation6], 0
    %10 = vsyncpa [#allocation4], 0
    // Predicated region
    $region2: #{tpu_custom_call.1} parent=1 // pred_check
      _
    $region3: #{tpu_custom_call.1} parent=1 // pred_check_branch
      %12 = sbr.rel (0) target = $region5
    $region4: #{tpu_custom_call.1} parent=1 // pred_region
      %s13 = sadd.s32 0, 0
      %s15 = ssub.s32 128, 128
      %16 = vsyncadd [#allocation3], %s15
      %s17 = smul.addr %s13, 128
      %s18 = scalar_lea.hbm %s0, %s17
      %s20 = sshll.u32 [#allocation2], 4
      %s21 = int_to_ptr.vmem [resolvable:$true] %s20
      %23 = dma.hbm_to_vmem [thread:$0]  %s18, 128, %s21, [#allocation3]
    $region5: #{tpu_custom_call.1} parent=1 // pred_fallthru
      _
    // Predicated region
    $region6: #{tpu_custom_call.1} parent=1 // pred_check
      _
    $region7: #{tpu_custom_call.1} parent=1 // pred_check_branch
      %25 = sbr.rel (0) target = $region9
    $region8: #{tpu_custom_call.1} parent=1 // pred_region
      %s27 = ssub.s32 256, 256
      %28 = vsyncadd [#allocation6], %s27
      %s29 = sshll.u32 [#allocation5], 4
      %s30 = int_to_ptr.vmem [resolvable:$true] %s29
      %35 = dma.hbm_to_vmem [thread:$0]  %s1, 256, %s30, [#allocation6], 128, 128, 8
    $region9: #{tpu_custom_call.1} parent=1 // pred_fallthru
      _
    // Predicated region
    $region10: #{tpu_custom_call.1} parent=1 // pred_check
      _
    $region11: #{tpu_custom_call.1} parent=1 // pred_check_branch
      %37 = sbr.rel (0) target = $region13
    $region12: #{tpu_custom_call.1} parent=1 // pred_region
      _
    $region13: #{tpu_custom_call.1} parent=1 // pred_fallthru
      _
    // Predicated region
    $region14: #{tpu_custom_call.1} parent=1 // pred_check
      _
    $region15: #{tpu_custom_call.1} parent=1 // pred_check_branch
      %39 = sbr.rel (0) target = $region17
    $region16: #{tpu_custom_call.1} parent=1 // pred_region
      %40 = dma.done [#allocation3], 128
    $region17: #{tpu_custom_call.1} parent=1 // pred_fallthru
      _
    // Predicated region
    $region18: #{tpu_custom_call.1} parent=1 // pred_check
      _
    $region19: #{tpu_custom_call.1} parent=1 // pred_check_branch
      %42 = sbr.rel (0) target = $region21
    $region20: #{tpu_custom_call.1} parent=1 // pred_region
      %43 = dma.done [#allocation6], 256
    $region21: #{tpu_custom_call.1} parent=1 // pred_fallthru
      _
    %s44 = sadd.s32 0, 0
    %p45 = scmp.eq.s32.totalorder 0, 0
    // Predicated region
    $region22: #{tpu_custom_call.1} parent=1 // pred_check
      %p46 = pneg %p45
    $region23: #{tpu_custom_call.1} parent=1 // pred_check_branch
      %48 = sbr.rel (%p46) target = $region25
    $region24: #{tpu_custom_call.1} parent=1 // pred_region
      %vm49 = vcmask 261120
      %50 = vst.msk [vmem:[#allocation7] sm:$0xff] %vm49, 0.0
    $region25: #{tpu_custom_call.1} parent=1 // pred_fallthru
      _
    %v51 = vld [vmem:[#allocation2] sm:$0xff]
    %v52 = vld [vmem:[#allocation5] sm:$0xff]
    %v53 = vld [vmem:[#allocation5 + $0x8] sm:$0xff]
    %v54 = vld [vmem:[%s2] sm:$0x1]
    %v56 = vlaneseq
    %v57 = vshrl.u32 %v56, 7
    %v58 = vsub.s32 0, %v57
    %v59 = vrot.slane %v54, %v58
    %vm61 = vcmask 130048
    %v63 = vsel %vm61, %v51, 0
    %65 = vmatprep.subr.mxu0 0.0
    %66 = vmatpush1.msra.mxu0 %v52
    %67 = vmatprep.subr.mxu0 0.0
    %68 = vmatpush1.msra.mxu0 %v53
    %69 = vmatprep.subr.mxu0 0.0
    %70 = vmatpush1.msra.mxu0 0.0
    %71 = vmatprep.subr.mxu0 0.0
    %72 = vmatpush1.msra.mxu0 0.0
    %73 = vmatprep.subr.mxu0 0.0
    %74 = vmatpush1.msra.mxu0 0.0
    %75 = vmatprep.subr.mxu0 0.0
    %76 = vmatpush1.msra.mxu0 0.0
    %77 = vmatprep.subr.mxu0 0.0
    %78 = vmatpush1.msra.mxu0 0.0
    %79 = vmatprep.subr.mxu0 0.0
    %80 = vmatpush1.msra.mxu0 0.0
    %81 = vmatprep.subr.mxu0 0.0
    %82 = vmatpush1.msra.mxu0 0.0
    %83 = vmatprep.subr.mxu0 0.0
    %84 = vmatpush1.msra.mxu0 0.0
    %85 = vmatprep.subr.mxu0 0.0
    %86 = vmatpush1.msra.mxu0 0.0
    %87 = vmatprep.subr.mxu0 0.0
    %88 = vmatpush1.msra.mxu0 0.0
    %89 = vmatprep.subr.mxu0 0.0
    %90 = vmatpush1.msra.mxu0 0.0
    %91 = vmatprep.subr.mxu0 0.0
    %92 = vmatpush1.msra.mxu0 0.0
    %93 = vmatprep.subr.mxu0 0.0
    %94 = vmatpush1.msra.mxu0 0.0
    %95 = vmatprep.subr.mxu0 0.0
    %96 = vmatpush1.msra.mxu0 0.0
    %97 = vmatprep.subr.mxu0 0.0
    %98 = vmatpush1.msra.mxu0 0.0
    %99 = vmatprep.subr.mxu0 0.0
    %100 = vmatpush1.msra.mxu0 0.0
    %101 = vmatprep.subr.mxu0 0.0
    %102 = vmatpush1.msra.mxu0 0.0
    %103 = vmatprep.subr.mxu0 0.0
    %104 = vmatpush1.msra.mxu0 0.0
    %105 = vmatprep.subr.mxu0 0.0
    %106 = vmatpush1.msra.mxu0 0.0
    %107 = vmatprep.subr.mxu0 0.0
    %108 = vmatpush1.msra.mxu0 0.0
    %109 = vmatprep.subr.mxu0 0.0
    %110 = vmatpush1.msra.mxu0 0.0
    %111 = vmatprep.subr.mxu0 0.0
    %112 = vmatpush1.msra.mxu0 0.0
    %113 = vmatprep.subr.mxu0 0.0
    %114 = vmatpush1.msra.mxu0 0.0
    %115 = vmatprep.subr.mxu0 0.0
    %116 = vmatpush1.msra.mxu0 0.0
    %117 = vmatprep.subr.mxu0 0.0
    %118 = vmatpush1.msra.mxu0 0.0
    %119 = vmatprep.subr.mxu0 0.0
    %120 = vmatpush1.msra.mxu0 0.0
    %121 = vmatprep.subr.mxu0 0.0
    %122 = vmatpush1.msra.mxu0 0.0
    %123 = vmatprep.subr.mxu0 0.0
    %124 = vmatpush1.msra.mxu0 0.0
    %125 = vmatprep.subr.mxu0 0.0
    %126 = vmatpush1.msra.mxu0 0.0
    %127 = vmatprep.subr.mxu0 0.0
    %128 = vmatpush1.msra.mxu0 0.0
    %129 = vmatprep.mubr.f32.mxu0 0.0
    %130 = vmatmul.mubr.f32.gmra.mrb[0].mxu0 %v63
    %v131 = vpop.f32.mrb[0].mxu0
    %v132 = vadd.f32 %v59, %v131
    %v133 = vpop.f32.mrb[0].mxu0
    %134 = vdwg.mxu0
    %v135 = vmax.f32 %v132, 0.0
    %v136 = vld [vmem:[#allocation7] sm:$0xff]
    %vm137 = vcmask 64512
    %v139 = vsel %vm137, 1.0, 0
    %141 = vmatprep.subr.mxu0 0.0
    %142 = vmatpush1.msra.mxu0 %v135
    %143 = vmatprep.subr.mxu0 0.0
    %144 = vmatpush1.msra.mxu0 0.0
    %145 = vmatprep.subr.mxu0 0.0
    %146 = vmatpush1.msra.mxu0 0.0
    %147 = vmatprep.subr.mxu0 0.0
    %148 = vmatpush1.msra.mxu0 0.0
    %149 = vmatprep.subr.mxu0 0.0
    %150 = vmatpush1.msra.mxu0 0.0
    %151 = vmatprep.subr.mxu0 0.0
    %152 = vmatpush1.msra.mxu0 0.0
    %153 = vmatprep.subr.mxu0 0.0
    %154 = vmatpush1.msra.mxu0 0.0
    %155 = vmatprep.subr.mxu0 0.0
    %156 = vmatpush1.msra.mxu0 0.0
    %157 = vmatprep.subr.mxu0 0.0
    %158 = vmatpush1.msra.mxu0 0.0
    %159 = vmatprep.subr.mxu0 0.0
    %160 = vmatpush1.msra.mxu0 0.0
    %161 = vmatprep.subr.mxu0 0.0
    %162 = vmatpush1.msra.mxu0 0.0
    %163 = vmatprep.subr.mxu0 0.0
    %164 = vmatpush1.msra.mxu0 0.0
    %165 = vmatprep.subr.mxu0 0.0
    %166 = vmatpush1.msra.mxu0 0.0
    %167 = vmatprep.subr.mxu0 0.0
    %168 = vmatpush1.msra.mxu0 0.0
    %169 = vmatprep.subr.mxu0 0.0
    %170 = vmatpush1.msra.mxu0 0.0
    %171 = vmatprep.subr.mxu0 0.0
    %172 = vmatpush1.msra.mxu0 0.0
    %173 = vmatprep.subr.mxu0 0.0
    %174 = vmatpush1.msra.mxu0 0.0
    %175 = vmatprep.subr.mxu0 0.0
    %176 = vmatpush1.msra.mxu0 0.0
    %177 = vmatprep.subr.mxu0 0.0
    %178 = vmatpush1.msra.mxu0 0.0
    %179 = vmatprep.subr.mxu0 0.0
    %180 = vmatpush1.msra.mxu0 0.0
    %181 = vmatprep.subr.mxu0 0.0
    %182 = vmatpush1.msra.mxu0 0.0
    %183 = vmatprep.subr.mxu0 0.0
    %184 = vmatpush1.msra.mxu0 0.0
    %185 = vmatprep.subr.mxu0 0.0
    %186 = vmatpush1.msra.mxu0 0.0
    %187 = vmatprep.subr.mxu0 0.0
    %188 = vmatpush1.msra.mxu0 0.0
    %189 = vmatprep.subr.mxu0 0.0
    %190 = vmatpush1.msra.mxu0 0.0
    %191 = vmatprep.subr.mxu0 0.0
    %192 = vmatpush1.msra.mxu0 0.0
    %193 = vmatprep.subr.mxu0 0.0
    %194 = vmatpush1.msra.mxu0 0.0
    %195 = vmatprep.subr.mxu0 0.0
    %196 = vmatpush1.msra.mxu0 0.0
    %197 = vmatprep.subr.mxu0 0.0
    %198 = vmatpush1.msra.mxu0 0.0
    %199 = vmatprep.subr.mxu0 0.0
    %200 = vmatpush1.msra.mxu0 0.0
    %201 = vmatprep.subr.mxu0 0.0
    %202 = vmatpush1.msra.mxu0 0.0
    %203 = vmatprep.subr.mxu0 0.0
    %204 = vmatpush1.msra.mxu0 0.0
    %205 = vmatprep.mubr.f32.mxu0 0.0
    %206 = vmatmul.mubr.f32.gmra.mrb[0].mxu0 %v139
    %v207 = vpop.f32.mrb[0].mxu0
    %v208 = vadd.f32 0.0, %v207
    %v209 = vpop.f32.mrb[0].mxu0
    %210 = vdwg.mxu0
    %v211 = vadd.f32 %v136, %v208
    %vm212 = vcmask 261120
    %213 = vst.msk [vmem:[#allocation7] sm:$0xff] %vm212, %v211
    // Predicated region
    $region26: #{tpu_custom_call.1} parent=1 // pred_check
      _
    $region27: #{tpu_custom_call.1} parent=1 // pred_check_branch
      %215 = sbr.rel (0) target = $region29
    $region28: #{tpu_custom_call.1} parent=1 // pred_region
      %s217 = ssub.s32 128, 128
      %218 = vsyncadd [#allocation4], %s217
      %s220 = sshll.u32 [#allocation7], 4
      %s221 = int_to_ptr.vmem [resolvable:$true] %s220
      %223 = dma.vmem_to_hbm [thread:$0]  %s221, 128, %s3, [#allocation4]
    $region29: #{tpu_custom_call.1} parent=1 // pred_fallthru
      _
    // Predicated region
    $region30: #{tpu_custom_call.1} parent=1 // pred_check
      _
    $region31: #{tpu_custom_call.1} parent=1 // pred_check_branch
      %225 = sbr.rel (0) target = $region33
    $region32: #{tpu_custom_call.1} parent=1 // pred_region
      %226 = dma.done [#allocation4], 128
    $region33: #{tpu_custom_call.1} parent=1 // pred_fallthru
      _
    %227 = vsyncpa [#allocation3], 1
    %228 = vsyncpa [#allocation6], 1
    %229 = vsyncpa [#allocation4], 1

</llo_original>
